<compile_context>
chip_gen: v7x
topology: tpu7x:2x2x1
jax: 0.10.0
libtpu: 0.0.40
codegen_flags: <defaults>
</compile_context>

<pallas_src>
import jax
import jax.numpy as jnp
from jax.experimental import pallas as pl
from jax.experimental.pallas import tpu as pltpu


def attention_kernel(x_ref, ctx_ref, w1_ref, w2_ref, o_ref, m_sc, l_sc, acc_sc):
    t = pl.program_id(1)

    @pl.when(t == 0)
    def _init():
        m_sc[...] = jnp.full_like(m_sc, -jnp.inf)
        l_sc[...] = jnp.zeros_like(l_sc)
        acc_sc[...] = jnp.zeros_like(acc_sc)

    x = x_ref[...].astype(jnp.float32)        # (BB, D)   resident across T steps
    ctx = ctx_ref[...].astype(jnp.float32)    # (BB, TT, D) streamed tile

    # scores[b, t] = <ctx[b, t, :], x[b, :]>  — VPU multiply + lane reduce
    # (avoids serializing BB tiny MXU mat-vecs; kernel is HBM-bound anyway).
    scores = jnp.sum(ctx * x[:, None, :], axis=-1)            # (BB, TT) f32

    # Online softmax update.
    m_prev = m_sc[...]                                        # (BB, 1)
    m_new = jnp.maximum(m_prev, jnp.max(scores, axis=-1, keepdims=True))
    alpha = jnp.exp(m_prev - m_new)                           # (BB, 1)
    p = jnp.exp(scores - m_new)                               # (BB, TT)

    l_sc[...] = alpha * l_sc[...] + jnp.sum(p, axis=-1, keepdims=True)
    # Partial weighted context: broadcast-multiply + sublane reduce (VPU+XLU).
    acc_sc[...] = alpha * acc_sc[...] + jnp.sum(p[:, :, None] * ctx, axis=1)
    m_sc[...] = m_new

    @pl.when(t == pl.num_programs(1) - 1)
    def _finalize():
        # Exact divide: runs once per batch block; the approximate EUP
        # reciprocal was not accurate enough for 1e-3 output tolerance.
        wc = acc_sc[...] / l_sc[...]                          # (BB, D) f32
        o = (jnp.dot(x.astype(w1_ref.dtype), w1_ref[...],
                     preferred_element_type=jnp.float32)
             + jnp.dot(wc.astype(w2_ref.dtype), w2_ref[...],
                       preferred_element_type=jnp.float32))
        o_ref[...] = jnp.tanh(o).astype(o_ref.dtype)


def split_weight(weight):
    """One-time host-side prep: nn.Linear (D, 2D) weight -> (W1^T, W2^T)."""
    D = weight.shape[0]
    w_t = weight.T                       # (2D, D)
    return w_t[:D, :], w_t[D:, :]        # each (D, D)


def _choose_block(total, target, aligns=(128, 8)):
    """Largest divisor of `total` that is <= target and a multiple of one of
    `aligns` (tried in order); otherwise the full axis (full-dim blocks are
    always legal)."""
    if total <= target:
        return total
    for align in aligns:
        start = (target // align) * align
        for cand in range(start, 0, -align):
            if total % cand == 0:
                return cand
    return total


def attention_forward(x, context, w1_t, w2_t, *, batch_block=None, seq_block=None):
    """x: (B, D), context: (B, T, D), w1_t/w2_t: (D, D) pre-split transposed weights."""
    B, D = x.shape
    Bc, T, Dc = context.shape
    assert Bc == B and Dc == D

    itemsize = jnp.dtype(context.dtype).itemsize
    bb = batch_block if batch_block is not None else _choose_block(B, 128)
    if seq_block is None:
        # Budget ~4 MiB per context buffer so 2x buffering + weights + scratch
        # stay well under the default scoped-VMEM limit on every generation.
        budget = 4 * 1024 * 1024
        tt_target = max(8, budget // max(1, bb * D * itemsize))
        tt = _choose_block(T, min(T, tt_target))
    else:
        tt = seq_block

    grid = (B // bb, T // tt)

    return pl.pallas_call(
        attention_kernel,
        out_shape=jax.ShapeDtypeStruct((B, D), x.dtype),
        grid_spec=pltpu.PrefetchScalarGridSpec(
            num_scalar_prefetch=0,
            grid=grid,
            in_specs=[
                pl.BlockSpec((bb, D), lambda b, t: (b, 0)),         # x: resident over T
                pl.BlockSpec((bb, tt, D), lambda b, t: (b, t, 0)),  # context stream
                pl.BlockSpec((D, D), lambda b, t: (0, 0)),          # W1^T: resident
                pl.BlockSpec((D, D), lambda b, t: (0, 0)),          # W2^T: resident
            ],
            out_specs=pl.BlockSpec((bb, D), lambda b, t: (b, 0)),   # accumulator output
            scratch_shapes=[
                pltpu.VMEM((bb, 1), jnp.float32),   # running max  m
                pltpu.VMEM((bb, 1), jnp.float32),   # running sum  l
                pltpu.VMEM((bb, D), jnp.float32),   # running weighted-context acc
            ],
        ),
        compiler_params=pltpu.CompilerParams(
            dimension_semantics=("parallel", "arbitrary"),
        ),
    )(x, context, w1_t, w2_t)


attention_forward = jax.jit(attention_forward,
                            static_argnames=("batch_block", "seq_block"))


def attention_reference(x, context, weight):
    scores = jnp.einsum("btd,bd->bt", context, x)
    attn = jax.nn.softmax(scores, axis=1)
    wc = jnp.einsum("bt,btd->bd", attn, context)
    o = jnp.concatenate([x, wc], axis=1) @ weight.T
    return jnp.tanh(o)


if __name__ == "__main__":
    def run_case(B, T, D, key, **blocks):
        kx, kc, kw = jax.random.split(key, 3)
        x = jax.random.normal(kx, (B, D), dtype=jnp.float32)
        context = jax.random.normal(kc, (B, T, D), dtype=jnp.float32)
        # nn.Linear(dim*2, dim, bias=False) weight has shape (D, 2D).
        weight = jax.random.normal(kw, (D, 2 * D), dtype=jnp.float32) * 0.1
        w1_t, w2_t = split_weight(weight)   # one-time prep outside the kernel call
        out = jax.block_until_ready(attention_forward(x, context, w1_t, w2_t, **blocks))
        ref = attention_reference(x, context, weight)
        assert out.shape == (B, D)
        err = jnp.max(jnp.abs(out - ref))
        assert jnp.allclose(out, ref, atol=1e-3, rtol=1e-3), (
            f"mismatch vs reference (B={B}, T={T}, D={D}): max abs err {err}")

    # Small shapes consistent with the module: batch=2, seq=8, hidden=32.
    run_case(2, 8, 32, jax.random.PRNGKey(0))
    # Larger case that exercises a real (batch x seq) grid and the online softmax.
    run_case(16, 512, 128, jax.random.PRNGKey(1), batch_block=8, seq_block=128)

    print("KERNEL_OK")
</pallas_src>

<mosaic_0001>
module attributes {stable_mosaic.version = 11 : i64} {
  func.func @attention_kernel(%arg0: i32, %arg1: i32, %arg2: memref<2x32xf32, #tpu.memory_space<vmem>>, %arg3: memref<2x8x32xf32, #tpu.memory_space<vmem>>, %arg4: memref<32x32xf32, #tpu.memory_space<vmem>>, %arg5: memref<32x32xf32, #tpu.memory_space<vmem>>, %arg6: memref<2x32xf32, #tpu.memory_space<vmem>>, %arg7: memref<2x1xf32, #tpu.memory_space<vmem>>, %arg8: memref<2x1xf32, #tpu.memory_space<vmem>>, %arg9: memref<2x32xf32, #tpu.memory_space<vmem>>) attributes {dimension_semantics = [#tpu.dimension_semantics<parallel>, #tpu.dimension_semantics<arbitrary>], iteration_bounds = array<i64: 1, 1>, scalar_prefetch = 0 : i64, scratch_operands = 3 : i64, tpu.core_type = #tpu.core_type<tc>, window_params = [{transform_indices = @transform_0, window_bounds = array<i64: 2, 32>}, {transform_indices = @transform_1, window_bounds = array<i64: 2, 8, 32>}, {pipeline_mode = #tpu.pipeline_mode<synchronous>, transform_indices = @transform_2, window_bounds = array<i64: 32, 32>}, {pipeline_mode = #tpu.pipeline_mode<synchronous>, transform_indices = @transform_3, window_bounds = array<i64: 32, 32>}, {transform_indices = @transform_4, window_bounds = array<i64: 2, 32>}]} {
    %c0_i32 = arith.constant 0 : i32
    %0 = arith.cmpi eq, %arg1, %c0_i32 : i32
    %1 = arith.extui %0 : i1 to i32
    %c0_i32_0 = arith.constant 0 : i32
    %2 = arith.cmpi ne, %1, %c0_i32_0 : i32
    scf.if %2 {
      %cst_22 = arith.constant 0xFF800000 : f32
      %37 = vector.broadcast %cst_22 : f32 to vector<2x1xf32>
      %c0_23 = arith.constant 0 : index
      %c0_24 = arith.constant 0 : index
      %38 = vector.load %arg7[%c0_23, %c0_24] : memref<2x1xf32, #tpu.memory_space<vmem>>, vector<2x1xf32>
      tpu.vector_store %arg7[%c0_23, %c0_24], %37 {strides = array<i32>} : memref<2x1xf32, #tpu.memory_space<vmem>>, vector<2x1xf32>,
      %cst_25 = arith.constant 0.000000e+00 : f32
      %39 = vector.broadcast %cst_25 : f32 to vector<2x1xf32>
      %c0_26 = arith.constant 0 : index
      %c0_27 = arith.constant 0 : index
      %40 = vector.load %arg8[%c0_26, %c0_27] : memref<2x1xf32, #tpu.memory_space<vmem>>, vector<2x1xf32>
      tpu.vector_store %arg8[%c0_26, %c0_27], %39 {strides = array<i32>} : memref<2x1xf32, #tpu.memory_space<vmem>>, vector<2x1xf32>,
      %cst_28 = arith.constant 0.000000e+00 : f32
      %41 = vector.broadcast %cst_28 : f32 to vector<2x32xf32>
      %c0_29 = arith.constant 0 : index
      %c0_30 = arith.constant 0 : index
      %42 = vector.load %arg9[%c0_29, %c0_30] : memref<2x32xf32, #tpu.memory_space<vmem>>, vector<2x32xf32>
      tpu.vector_store %arg9[%c0_29, %c0_30], %41 {strides = array<i32>} : memref<2x32xf32, #tpu.memory_space<vmem>>, vector<2x32xf32>,
    } else {
    }
    %c0 = arith.constant 0 : index
    %c0_1 = arith.constant 0 : index
    %3 = vector.load %arg2[%c0, %c0_1] : memref<2x32xf32, #tpu.memory_space<vmem>>, vector<2x32xf32>
    %c0_2 = arith.constant 0 : index
    %c0_3 = arith.constant 0 : index
    %c0_4 = arith.constant 0 : index
    %4 = vector.load %arg3[%c0_2, %c0_3, %c0_4] : memref<2x8x32xf32, #tpu.memory_space<vmem>>, vector<2x8x32xf32>
    %5 = vector.shape_cast %3 : vector<2x32xf32> to vector<2x1x32xf32>
    %6 = vector.broadcast %5 : vector<2x1x32xf32> to vector<2x8x32xf32>
    %7 = arith.mulf %4, %6 : vector<2x8x32xf32>
    %cst = arith.constant dense<0.000000e+00> : vector<2x8xf32>
    %8 = vector.multi_reduction <add>, %7, %cst [2] : vector<2x8x32xf32> to vector<2x8xf32>
    %c0_5 = arith.constant 0 : index
    %c0_6 = arith.constant 0 : index
    %9 = vector.load %arg7[%c0_5, %c0_6] : memref<2x1xf32, #tpu.memory_space<vmem>>, vector<2x1xf32>
    %cst_7 = arith.constant dense<0xFF800000> : vector<2xf32>
    %10 = vector.multi_reduction <maximumf>, %8, %cst_7 [1] : vector<2x8xf32> to vector<2xf32>
    %11 = vector.shape_cast %10 : vector<2xf32> to vector<2x1xf32>
    %12 = arith.maximumf %9, %11 : vector<2x1xf32>
    %13 = arith.subf %9, %12 : vector<2x1xf32>
    %14 = math.exp %13 : vector<2x1xf32>
    %15 = vector.broadcast %12 : vector<2x1xf32> to vector<2x8xf32>
    %16 = arith.subf %8, %15 : vector<2x8xf32>
    %17 = math.exp %16 : vector<2x8xf32>
    %c0_8 = arith.constant 0 : index
    %c0_9 = arith.constant 0 : index
    %18 = vector.load %arg8[%c0_8, %c0_9] : memref<2x1xf32, #tpu.memory_space<vmem>>, vector<2x1xf32>
    %19 = arith.mulf %14, %18 : vector<2x1xf32>
    %cst_10 = arith.constant dense<0.000000e+00> : vector<2xf32>
    %20 = vector.multi_reduction <add>, %17, %cst_10 [1] : vector<2x8xf32> to vector<2xf32>
    %21 = vector.shape_cast %20 : vector<2xf32> to vector<2x1xf32>
    %22 = arith.addf %19, %21 : vector<2x1xf32>
    %c0_11 = arith.constant 0 : index
    %c0_12 = arith.constant 0 : index
    %23 = vector.load %arg8[%c0_11, %c0_12] : memref<2x1xf32, #tpu.memory_space<vmem>>, vector<2x1xf32>
    tpu.vector_store %arg8[%c0_11, %c0_12], %22 {strides = array<i32>} : memref<2x1xf32, #tpu.memory_space<vmem>>, vector<2x1xf32>,
    %c0_13 = arith.constant 0 : index
    %c0_14 = arith.constant 0 : index
    %24 = vector.load %arg9[%c0_13, %c0_14] : memref<2x32xf32, #tpu.memory_space<vmem>>, vector<2x32xf32>
    %25 = vector.broadcast %14 : vector<2x1xf32> to vector<2x32xf32>
    %26 = arith.mulf %25, %24 : vector<2x32xf32>
    %27 = vector.shape_cast %17 : vector<2x8xf32> to vector<2x8x1xf32>
    %28 = vector.broadcast %27 : vector<2x8x1xf32> to vector<2x8x32xf32>
    %29 = arith.mulf %28, %4 : vector<2x8x32xf32>
    %cst_15 = arith.constant dense<0.000000e+00> : vector<2x32xf32>
    %30 = vector.multi_reduction <add>, %29, %cst_15 [1] : vector<2x8x32xf32> to vector<2x32xf32>
    %31 = arith.addf %26, %30 : vector<2x32xf32>
    %c0_16 = arith.constant 0 : index
    %c0_17 = arith.constant 0 : index
    %32 = vector.load %arg9[%c0_16, %c0_17] : memref<2x32xf32, #tpu.memory_space<vmem>>, vector<2x32xf32>
    tpu.vector_store %arg9[%c0_16, %c0_17], %31 {strides = array<i32>} : memref<2x32xf32, #tpu.memory_space<vmem>>, vector<2x32xf32>,
    %c0_18 = arith.constant 0 : index
    %c0_19 = arith.constant 0 : index
    %33 = vector.load %arg7[%c0_18, %c0_19] : memref<2x1xf32, #tpu.memory_space<vmem>>, vector<2x1xf32>
    tpu.vector_store %arg7[%c0_18, %c0_19], %12 {strides = array<i32>} : memref<2x1xf32, #tpu.memory_space<vmem>>, vector<2x1xf32>,
    %c0_i32_20 = arith.constant 0 : i32
    %34 = arith.cmpi eq, %arg1, %c0_i32_20 : i32
    %35 = arith.extui %34 : i1 to i32
    %c0_i32_21 = arith.constant 0 : i32
    %36 = arith.cmpi ne, %35, %c0_i32_21 : i32
    scf.if %36 {
      %c0_22 = arith.constant 0 : index
      %c0_23 = arith.constant 0 : index
      %37 = vector.load %arg9[%c0_22, %c0_23] : memref<2x32xf32, #tpu.memory_space<vmem>>, vector<2x32xf32>
      %c0_24 = arith.constant 0 : index
      %c0_25 = arith.constant 0 : index
      %38 = vector.load %arg8[%c0_24, %c0_25] : memref<2x1xf32, #tpu.memory_space<vmem>>, vector<2x1xf32>
      %39 = vector.broadcast %38 : vector<2x1xf32> to vector<2x32xf32>
      %40 = arith.divf %37, %39 : vector<2x32xf32>
      %c0_26 = arith.constant 0 : index
      %c0_27 = arith.constant 0 : index
      %41 = vector.load %arg4[%c0_26, %c0_27] : memref<32x32xf32, #tpu.memory_space<vmem>>, vector<32x32xf32>
      %cst_28 = arith.constant dense<0.000000e+00> : vector<2x32xf32>
      %42 = tpu.matmul %3, %41, %cst_28 {dimension_numbers = #tpu.dot_dimension_numbers<[1], [0], [0], [1], [0, 0, 1, 1], [], []>} : vector<2x32xf32>, vector<32x32xf32>, vector<2x32xf32> -> vector<2x32xf32>
      %c0_29 = arith.constant 0 : index
      %c0_30 = arith.constant 0 : index
      %43 = vector.load %arg5[%c0_29, %c0_30] : memref<32x32xf32, #tpu.memory_space<vmem>>, vector<32x32xf32>
      %cst_31 = arith.constant dense<0.000000e+00> : vector<2x32xf32>
      %44 = tpu.matmul %40, %43, %cst_31 {dimension_numbers = #tpu.dot_dimension_numbers<[1], [0], [0], [1], [0, 0, 1, 1], [], []>} : vector<2x32xf32>, vector<32x32xf32>, vector<2x32xf32> -> vector<2x32xf32>
      %45 = arith.addf %42, %44 : vector<2x32xf32>
      %46 = math.tanh %45 : vector<2x32xf32>
      %c0_32 = arith.constant 0 : index
      %c0_33 = arith.constant 0 : index
      %47 = vector.load %arg6[%c0_32, %c0_33] : memref<2x32xf32, #tpu.memory_space<vmem>>, vector<2x32xf32>
      tpu.vector_store %arg6[%c0_32, %c0_33], %46 {strides = array<i32>} : memref<2x32xf32, #tpu.memory_space<vmem>>, vector<2x32xf32>,
    } else {
    }
    return
  }
  func.func @transform_0(%arg0: i32, %arg1: i32) -> (i32, i32) {
    %c0_i32 = arith.constant 0 : i32
    %c0_i32_0 = arith.constant 0 : i32
    return %arg0, %c0_i32 : i32, i32
  }
  func.func @transform_1(%arg0: i32, %arg1: i32) -> (i32, i32, i32) {
    %c0_i32 = arith.constant 0 : i32
    %c0_i32_0 = arith.constant 0 : i32
    return %arg0, %arg1, %c0_i32 : i32, i32, i32
  }
  func.func @transform_2(%arg0: i32, %arg1: i32) -> (i32, i32) {
    %c0_i32 = arith.constant 0 : i32
    %c0_i32_0 = arith.constant 0 : i32
    %c0_i32_1 = arith.constant 0 : i32
    return %c0_i32, %c0_i32_0 : i32, i32
  }
  func.func @transform_3(%arg0: i32, %arg1: i32) -> (i32, i32) {
    %c0_i32 = arith.constant 0 : i32
    %c0_i32_0 = arith.constant 0 : i32
    %c0_i32_1 = arith.constant 0 : i32
    return %c0_i32, %c0_i32_0 : i32, i32
  }
  func.func @transform_4(%arg0: i32, %arg1: i32) -> (i32, i32) {
    %c0_i32 = arith.constant 0 : i32
    %c0_i32_0 = arith.constant 0 : i32
    return %arg0, %c0_i32 : i32, i32
  }
}

</mosaic_0001>

<llo_original>
// kernel: attention_forward.1
$region0: #{attention_forward.1}
  #allocation0 [shape = 'u32[]', space=smem, size = 0x4, offset = 0x4, fixed_abs, tag = 'smem constant byte address 0x4 - core index']
  #allocation1 [shape = 'u32[144,128]{1,0:T(1,128)}', space=vmem, size = 0x12000, scoped, tag = 'internal scratch']
  #allocation2 [shape = 'f32[2,1]{1,0:T(2,128)}', space=vmem, size = 0x400, scoped, tag = 'scratch operand']
  #allocation3 [shape = 'f32[2,1]{1,0:T(2,128)}', space=vmem, size = 0x400, scoped, tag = 'scratch operand']
  #allocation4 [shape = 'f32[2,32]{1,0:T(2,128)}', space=vmem, size = 0x400, scoped, tag = 'scratch operand']
  %s0 = inlined_call_operand.hbm [shape: f32[2,32], index: 0, kind: input, shape index: {}]
  %s1 = inlined_call_operand.hbm [shape: f32[2,8,32], index: 1, kind: input, shape index: {}]
  %s2 = inlined_call_operand.hbm [shape: f32[32,32], index: 2, kind: input, shape index: {}]
  %s3 = inlined_call_operand.hbm [shape: f32[32,32], index: 3, kind: input, shape index: {}]
  %s4 = inlined_call_operand.hbm [shape: f32[2,32], index: 4, kind: output, shape index: {}]
  %s5 = sld [smem:[#allocation0]]
  $region50: #{attention_forward.1} parent=0
    _
  %s7 = ssub.s32 1, %s5
  %s8 = scalar_select 0, %s7, %s5
  $region1: #{attention_forward.1} parent=0
    #allocation5 [shape = 'u8[1024]{0}', space=vmem, size = 0x400, scoped, tag = 'input window, operand 0, single buffered']
    #allocation6 [shape = 's32[1]{0}', space=sflag, size = 0x4, scoped, tag = 'scoped memory for attention_forward.1']
    #allocation7 [shape = 's32[1]{0}', space=sflag, size = 0x4, scoped, tag = 'scoped memory for attention_forward.1']
    #allocation8 [shape = 'u8[8192]{0}', space=vmem, size = 0x2000, scoped, tag = 'input window, operand 1, single buffered']
    #allocation9 [shape = 's32[1]{0}', space=sflag, size = 0x4, scoped, tag = 'scoped memory for attention_forward.1']
    #allocation10 [shape = 'u8[16384]{0}', space=vmem, size = 0x4000, scoped, tag = 'input window, operand 2, single buffered']
    #allocation11 [shape = 'u8[16384]{0}', space=vmem, size = 0x4000, scoped, tag = 'input window, operand 3, single buffered']
    #allocation12 [shape = 's32[1]{0}', space=sflag, size = 0x4, scoped, tag = 'scoped memory for attention_forward.1']
    #allocation13 [shape = 'u8[1024]{0}', space=vmem, size = 0x400, scoped, tag = 'output window, operand 0, single buffered']
    %9 = vsyncpa [#allocation6], 0
    %10 = vsyncpa [#allocation9], 0
    %11 = vsyncpa [#allocation12], 0
    %12 = vsyncpa [#allocation7], 0
    // Predicated region
    $region2: #{attention_forward.1} parent=1 // pred_check
      _
    $region3: #{attention_forward.1} parent=1 // pred_check_branch
      %14 = sbr.rel (0) target = $region5
    $region4: #{attention_forward.1} parent=1 // pred_region
      %s16 = ssub.s32 32, 32
      %17 = vsyncadd [#allocation6], %s16
      %s19 = sshll.u32 [#allocation5], 4
      %s20 = int_to_ptr.vmem [resolvable:$true] %s19
      %22 = dma.hbm_to_vmem [thread:$0]  %s0, 32, %s20, [#allocation6]
    $region5: #{attention_forward.1} parent=1 // pred_fallthru
      _
    // Predicated region
    $region6: #{attention_forward.1} parent=1 // pred_check
      _
    $region7: #{attention_forward.1} parent=1 // pred_check_branch
      %24 = sbr.rel (0) target = $region9
    $region8: #{attention_forward.1} parent=1 // pred_region
      %s26 = ssub.s32 256, 256
      %27 = vsyncadd [#allocation9], %s26
      %s28 = sshll.u32 [#allocation8], 4
      %s29 = int_to_ptr.vmem [resolvable:$true] %s28
      %34 = dma.hbm_to_vmem [thread:$0]  %s1, 256, %s29, [#allocation9], 128, 128, 8
    $region9: #{attention_forward.1} parent=1 // pred_fallthru
      _
    // Predicated region
    $region10: #{attention_forward.1} parent=1 // pred_check
      _
    $region11: #{attention_forward.1} parent=1 // pred_check_branch
      %36 = sbr.rel (0) target = $region13
    $region12: #{attention_forward.1} parent=1 // pred_region
      %s38 = ssub.s32 512, 512
      %39 = vsyncadd [#allocation9], %s38
      %s40 = sshll.u32 [#allocation10], 4
      %s41 = int_to_ptr.vmem [resolvable:$true] %s40
      %46 = dma.hbm_to_vmem [thread:$0]  %s2, 512, %s41, [#allocation9], 128, 128, 8
    $region13: #{attention_forward.1} parent=1 // pred_fallthru
      _
    // Predicated region
    $region14: #{attention_forward.1} parent=1 // pred_check
      _
    $region15: #{attention_forward.1} parent=1 // pred_check_branch
      %48 = sbr.rel (0) target = $region17
    $region16: #{attention_forward.1} parent=1 // pred_region
      %s50 = ssub.s32 512, 512
      %51 = vsyncadd [#allocation12], %s50
      %s52 = sshll.u32 [#allocation11], 4
      %s53 = int_to_ptr.vmem [resolvable:$true] %s52
      %58 = dma.hbm_to_vmem [thread:$0]  %s3, 512, %s53, [#allocation12], 128, 128, 8
    $region17: #{attention_forward.1} parent=1 // pred_fallthru
      _
    // Predicated region
    $region18: #{attention_forward.1} parent=1 // pred_check
      _
    $region19: #{attention_forward.1} parent=1 // pred_check_branch
      %60 = sbr.rel (0) target = $region21
    $region20: #{attention_forward.1} parent=1 // pred_region
      %61 = dma.done [#allocation6], 32
    $region21: #{attention_forward.1} parent=1 // pred_fallthru
      _
    // Predicated region
    $region22: #{attention_forward.1} parent=1 // pred_check
      _
    $region23: #{attention_forward.1} parent=1 // pred_check_branch
      %63 = sbr.rel (0) target = $region25
    $region24: #{attention_forward.1} parent=1 // pred_region
      %64 = dma.done [#allocation9], 256
    $region25: #{attention_forward.1} parent=1 // pred_fallthru
      _
    // Predicated region
    $region26: #{attention_forward.1} parent=1 // pred_check
      _
    $region27: #{attention_forward.1} parent=1 // pred_check_branch
      %66 = sbr.rel (0) target = $region29
    $region28: #{attention_forward.1} parent=1 // pred_region
      %67 = dma.done [#allocation9], 512
    $region29: #{attention_forward.1} parent=1 // pred_fallthru
      _
    // Predicated region
    $region30: #{attention_forward.1} parent=1 // pred_check
      _
    $region31: #{attention_forward.1} parent=1 // pred_check_branch
      %69 = sbr.rel (0) target = $region33
    $region32: #{attention_forward.1} parent=1 // pred_region
      %70 = dma.done [#allocation12], 512
    $region33: #{attention_forward.1} parent=1 // pred_fallthru
      _
    %p71 = scmp.eq.s32.totalorder 0, 0
    // Predicated region
    $region34: #{attention_forward.1} parent=1 // pred_check
      %p72 = pneg %p71
    $region35: #{attention_forward.1} parent=1 // pred_check_branch
      %74 = sbr.rel (%p72) target = $region37
    $region36: #{attention_forward.1} parent=1 // pred_region
      %vm75 = vcmask 1024
      %76 = vst.msk [vmem:[#allocation2] sm:$0x3] %vm75, -inf
      %77 = vst.msk [vmem:[#allocation3] sm:$0x3] %vm75, 0.0
      %vm78 = vcmask 254976
      %79 = vst.msk [vmem:[#allocation4] sm:$0x3] %vm78, 0.0
    $region37: #{attention_forward.1} parent=1 // pred_fallthru
      _
    %v80 = vld [vmem:[#allocation5] sm:$0x3]
    %v81 = vld [vmem:[#allocation8] sm:$0xff]
    %v82 = vld [vmem:[#allocation8 + $0x8] sm:$0xff]
    %v85 = vunpack.c.l.s4 1966171168
    %v86 = vunpack.c.0.s8 %v85
    %v87 = vlaneseq
    %v88 = vshrl.u32 %v87, 7
    %v89 = vsub.s32 %v86, %v88
    %v90 = vrot.slane %v80, %v89
    %v91 = vcombine.high %v90, %v90
    %v93 = vunpack.c.l.s4 1966171168
    %v94 = vunpack.c.0.s8 %v93
    %v95 = vlaneseq
    %v96 = vshrl.u32 %v95, 7
    %v97 = vsub.s32 %v94, %v96
    %v98 = vrot.slane %v90, %v97
    %v100 = vunpack.c.l.s4 1966171168
    %v101 = vunpack.c.0.s8 %v100
    %v102 = vlaneseq
    %v103 = vshrl.u32 %v102, 7
    %v104 = vsub.s32 %v101, %v103
    %v105 = vrot.slane %v91, %v104
    %v106 = vlaneseq
    %v107 = vshrl.u32 %v106, 7
    %v108 = vsub.s32 0, %v107
    %v109 = vrot.slane %v98, %v108
    %v110 = vlaneseq
    %v111 = vshrl.u32 %v110, 7
    %v112 = vsub.s32 0, %v111
    %v113 = vrot.slane %v105, %v112
    %v116 = vmul.f32 %v81, %v109
    %v117 = vmul.f32 %v82, %v113
    %vm118 = vcmask 261120
    %v119 = vsel %vm118, %v116, 0.0
    %120 = vadd.xlane.f32.xlu0 %v119
    %v121 = vpop.xlane.xlu0 %120
    %v122 = vsel %vm118, %v117, 0.0
    %123 = vadd.xlane.f32.xlu0 %v122
    %v124 = vpop.xlane.xlu0 %123
    %v125 = vld [vmem:[#allocation2] sm:$0x3]
    %v128 = vlaneseq
    %v129 = vand.u32 %v128, 127
    %v130 = vlaneseq
    %v131 = vshrl.u32 %v130, 7
    %v132 = vsub.s32 %v129, %v131
    %v133 = vrot.slane %v121, %v132
    %v134 = vlaneseq
    %v135 = vshrl.u32 %v134, 7
    %v136 = vsub.s32 %v129, %v135
    %v137 = vrot.slane %v124, %v136
    %vm138 = vcmask 1041409
    %v139 = vsel %vm138, %v137, %v133
    %vm141 = vcmask 58368
    %v142 = vsel %vm141, %v139, -inf
    %143 = vmax.xlane.f32.xlu0 %v142
    %v144 = vpop.xlane.xlu0 %143
    %v145 = vmax.f32 %v125, %v144
    %v146 = vsub.f32 %v125, %v145
    %v147 = vmul.f32 %v146, 1.442695
    %v148 = vpow.pop %v147
    %150 = vset.pattern.permute.xlu0 0
    %151 = vperm.xlu0 %150, %v145
    %v152 = vpop.permute.xlu0 %151
    %v153 = vlaneseq
    %v154 = vshrl.u32 %v153, 7
    %v155 = vsub.s32 0, %v154
    %v156 = vrot.slane %v152, %v155
    %v157 = vlaneseq
    %v158 = vshrl.u32 %v157, 7
    %v159 = vsub.s32 1, %v158
    %v160 = vrot.slane %v152, %v159
    %v163 = vsub.f32 %v121, %v156
    %v164 = vsub.f32 %v124, %v160
    %v165 = vmul.f32 %v163, 1.442695
    %v166 = vpow.pop %v165
    %v167 = vmul.f32 %v164, 1.442695
    %v168 = vpow.pop %v167
    %v169 = vld [vmem:[#allocation3] sm:$0x3]
    %v170 = vmul.f32 %v148, %v169
    %173 = vset.pattern.permute.xlu0 0
    %174 = vperm.xlu0 %173, %v166
    %v175 = vpop.permute.xlu0 %174
    %176 = vset.pattern.permute.xlu0 0
    %177 = vperm.xlu0 %176, %v168
    %v178 = vpop.permute.xlu0 %177
    %v179 = vlaneseq
    %v180 = vshrl.u32 %v179, 7
    %v181 = vsub.s32 %v129, %v180
    %v182 = vrot.slane %v175, %v181
    %v183 = vlaneseq
    %v184 = vshrl.u32 %v183, 7
    %v185 = vsub.s32 %v129, %v184
    %v186 = vrot.slane %v178, %v185
    %v187 = vsel %vm138, %v186, %v182
    %v189 = vsel %vm141, %v187, 0.0
    %190 = vadd.xlane.f32.xlu0 %v189
    %v191 = vpop.xlane.xlu0 %190
    %v192 = vadd.f32 %v170, %v191
    %vm193 = vcmask 1024
    %194 = vst.msk [vmem:[#allocation3] sm:$0x3] %vm193, %v192
    %v195 = vld [vmem:[#allocation4] sm:$0x3]
    %197 = vset.pattern.permute.xlu0 0
    %198 = vperm.xlu0 %197, %v148
    %v199 = vpop.permute.xlu0 %198
    %v201 = vmul.f32 %v199, %v195
    %v204 = vmul.f32 %v175, %v81
    %v205 = vmul.f32 %v178, %v82
    %v206 = vsel %vm118, %v204, 0.0
    %v207 = vrot.slane %v206, 4
    %v208 = vadd.f32 %v206, %v207
    %v209 = vrot.slane %v208, 2
    %v210 = vadd.f32 %v208, %v209
    %v211 = vrot.slane %v210, 1
    %v212 = vadd.f32 %v210, %v211
    %v213 = vsel %vm118, %v205, 0.0
    %v214 = vrot.slane %v213, 4
    %v215 = vadd.f32 %v213, %v214
    %v216 = vrot.slane %v215, 2
    %v217 = vadd.f32 %v215, %v216
    %v218 = vrot.slane %v217, 1
    %v219 = vadd.f32 %v217, %v218
    %v222 = vsel %vm138, %v219, %v212
    %v224 = vadd.f32 %v201, %v222
    %vm225 = vcmask 254976
    %226 = vst.msk [vmem:[#allocation4] sm:$0x3] %vm225, %v224
    %227 = vst.msk [vmem:[#allocation2] sm:$0x3] %vm193, %v145
    // Predicated region
    $region38: #{attention_forward.1} parent=1 // pred_check
      %p228 = pneg %p71
    $region39: #{attention_forward.1} parent=1 // pred_check_branch
      %230 = sbr.rel (%p228) target = $region41
    $region40: #{attention_forward.1} parent=1 // pred_region
      %v231 = vld [vmem:[#allocation4] sm:$0x3]
      %v232 = vld [vmem:[#allocation3] sm:$0x3]
      %234 = vset.pattern.permute.xlu0 0
      %235 = vperm.xlu0 %234, %v232
      %v236 = vpop.permute.xlu0 %235
      %v238 = vrcp.pop %v236
      %v239 = vmul.f32 %v231, %v238
      %v240 = vld [vmem:[#allocation10] sm:$0xff]
      %v241 = vld [vmem:[#allocation10 + $0x8] sm:$0xff]
      %v242 = vld [vmem:[#allocation10 + $0x10] sm:$0xff]
      %v243 = vld [vmem:[#allocation10 + $0x18] sm:$0xff]
      %v244 = vld [vmem:[#allocation11] sm:$0xff]
      %v245 = vld [vmem:[#allocation11 + $0x8] sm:$0xff]
      %v246 = vld [vmem:[#allocation11 + $0x10] sm:$0xff]
      %v247 = vld [vmem:[#allocation11 + $0x18] sm:$0xff]
      %v249 = vsel %vm118, %v239, 0
      %251 = vmatprep.subr.mxu0 0.0
      %252 = vmatpush1.msra.mxu0 %v244
      %253 = vmatprep.subr.mxu0 0.0
      %254 = vmatpush1.msra.mxu0 %v245
      %255 = vmatprep.subr.mxu0 0.0
      %256 = vmatpush1.msra.mxu0 %v246
      %257 = vmatprep.subr.mxu0 0.0
      %258 = vmatpush1.msra.mxu0 %v247
      %259 = vmatprep.subr.mxu0 0.0
      %260 = vmatpush1.msra.mxu0 0.0
      %261 = vmatprep.subr.mxu0 0.0
      %262 = vmatpush1.msra.mxu0 0.0
      %263 = vmatprep.subr.mxu0 0.0
      %264 = vmatpush1.msra.mxu0 0.0
      %265 = vmatprep.subr.mxu0 0.0
      %266 = vmatpush1.msra.mxu0 0.0
      %267 = vmatprep.subr.mxu0 0.0
      %268 = vmatpush1.msra.mxu0 0.0
      %269 = vmatprep.subr.mxu0 0.0
      %270 = vmatpush1.msra.mxu0 0.0
      %271 = vmatprep.subr.mxu0 0.0
      %272 = vmatpush1.msra.mxu0 0.0
      %273 = vmatprep.subr.mxu0 0.0
      %274 = vmatpush1.msra.mxu0 0.0
      %275 = vmatprep.subr.mxu0 0.0
      %276 = vmatpush1.msra.mxu0 0.0
      %277 = vmatprep.subr.mxu0 0.0
      %278 = vmatpush1.msra.mxu0 0.0
      %279 = vmatprep.subr.mxu0 0.0
      %280 = vmatpush1.msra.mxu0 0.0
      %281 = vmatprep.subr.mxu0 0.0
      %282 = vmatpush1.msra.mxu0 0.0
      %283 = vmatprep.subr.mxu0 0.0
      %284 = vmatpush1.msra.mxu0 0.0
      %285 = vmatprep.subr.mxu0 0.0
      %286 = vmatpush1.msra.mxu0 0.0
      %287 = vmatprep.subr.mxu0 0.0
      %288 = vmatpush1.msra.mxu0 0.0
      %289 = vmatprep.subr.mxu0 0.0
      %290 = vmatpush1.msra.mxu0 0.0
      %291 = vmatprep.subr.mxu0 0.0
      %292 = vmatpush1.msra.mxu0 0.0
      %293 = vmatprep.subr.mxu0 0.0
      %294 = vmatpush1.msra.mxu0 0.0
      %295 = vmatprep.subr.mxu0 0.0
      %296 = vmatpush1.msra.mxu0 0.0
      %297 = vmatprep.subr.mxu0 0.0
      %298 = vmatpush1.msra.mxu0 0.0
      %299 = vmatprep.subr.mxu0 0.0
      %300 = vmatpush1.msra.mxu0 0.0
      %301 = vmatprep.subr.mxu0 0.0
      %302 = vmatpush1.msra.mxu0 0.0
      %303 = vmatprep.subr.mxu0 0.0
      %304 = vmatpush1.msra.mxu0 0.0
      %305 = vmatprep.subr.mxu0 0.0
      %306 = vmatpush1.msra.mxu0 0.0
      %307 = vmatprep.subr.mxu0 0.0
      %308 = vmatpush1.msra.mxu0 0.0
      %309 = vmatprep.subr.mxu0 0.0
      %310 = vmatpush1.msra.mxu0 0.0
      %311 = vmatprep.subr.mxu0 0.0
      %312 = vmatpush1.msra.mxu0 0.0
      %313 = vmatprep.subr.mxu0 0.0
      %314 = vmatpush1.msra.mxu0 0.0
      %315 = vmatprep.mubr.f32.mxu0 0.0
      %316 = vmatmul.mubr.f32.gmra.mrb[0].mxu0 %v249
      %v317 = vpop.f32.mrb[0].mxu0
      %v318 = vadd.f32 0.0, %v317
      %v319 = vpop.f32.mrb[0].mxu0
      %320 = vdwg.mxu0
      %v321 = vsel %vm118, %v80, 0
      %323 = vmatprep.subr.mxu0 0.0
      %324 = vmatpush1.msra.mxu0 %v240
      %325 = vmatprep.subr.mxu0 0.0
      %326 = vmatpush1.msra.mxu0 %v241
      %327 = vmatprep.subr.mxu0 0.0
      %328 = vmatpush1.msra.mxu0 %v242
      %329 = vmatprep.subr.mxu0 0.0
      %330 = vmatpush1.msra.mxu0 %v243
      %331 = vmatprep.subr.mxu0 0.0
      %332 = vmatpush1.msra.mxu0 0.0
      %333 = vmatprep.subr.mxu0 0.0
      %334 = vmatpush1.msra.mxu0 0.0
      %335 = vmatprep.subr.mxu0 0.0
      %336 = vmatpush1.msra.mxu0 0.0
      %337 = vmatprep.subr.mxu0 0.0
      %338 = vmatpush1.msra.mxu0 0.0
      %339 = vmatprep.subr.mxu0 0.0
      %340 = vmatpush1.msra.mxu0 0.0
      %341 = vmatprep.subr.mxu0 0.0
      %342 = vmatpush1.msra.mxu0 0.0
      %343 = vmatprep.subr.mxu0 0.0
      %344 = vmatpush1.msra.mxu0 0.0
      %345 = vmatprep.subr.mxu0 0.0
      %346 = vmatpush1.msra.mxu0 0.0
      %347 = vmatprep.subr.mxu0 0.0
      %348 = vmatpush1.msra.mxu0 0.0
      %349 = vmatprep.subr.mxu0 0.0
      %350 = vmatpush1.msra.mxu0 0.0
      %351 = vmatprep.subr.mxu0 0.0
      %352 = vmatpush1.msra.mxu0 0.0
      %353 = vmatprep.subr.mxu0 0.0
      %354 = vmatpush1.msra.mxu0 0.0
      %355 = vmatprep.subr.mxu0 0.0
      %356 = vmatpush1.msra.mxu0 0.0
      %357 = vmatprep.subr.mxu0 0.0
      %358 = vmatpush1.msra.mxu0 0.0
      %359 = vmatprep.subr.mxu0 0.0
      %360 = vmatpush1.msra.mxu0 0.0
      %361 = vmatprep.subr.mxu0 0.0
      %362 = vmatpush1.msra.mxu0 0.0
      %363 = vmatprep.subr.mxu0 0.0
      %364 = vmatpush1.msra.mxu0 0.0
      %365 = vmatprep.subr.mxu0 0.0
      %366 = vmatpush1.msra.mxu0 0.0
      %367 = vmatprep.subr.mxu0 0.0
      %368 = vmatpush1.msra.mxu0 0.0
      %369 = vmatprep.subr.mxu0 0.0
      %370 = vmatpush1.msra.mxu0 0.0
      %371 = vmatprep.subr.mxu0 0.0
      %372 = vmatpush1.msra.mxu0 0.0
      %373 = vmatprep.subr.mxu0 0.0
      %374 = vmatpush1.msra.mxu0 0.0
      %375 = vmatprep.subr.mxu0 0.0
      %376 = vmatpush1.msra.mxu0 0.0
      %377 = vmatprep.subr.mxu0 0.0
      %378 = vmatpush1.msra.mxu0 0.0
      %379 = vmatprep.subr.mxu0 0.0
      %380 = vmatpush1.msra.mxu0 0.0
      %381 = vmatprep.subr.mxu0 0.0
      %382 = vmatpush1.msra.mxu0 0.0
      %383 = vmatprep.subr.mxu0 0.0
      %384 = vmatpush1.msra.mxu0 0.0
      %385 = vmatprep.subr.mxu0 0.0
      %386 = vmatpush1.msra.mxu0 0.0
      %387 = vmatprep.mubr.f32.mxu0 0.0
      %388 = vmatmul.mubr.f32.gmra.mrb[0].mxu0 %v321
      %v389 = vpop.f32.mrb[0].mxu0
      %v390 = vadd.f32 %v318, %v389
      %v391 = vpop.f32.mrb[0].mxu0
      %392 = vdwg.mxu0
      %v393 = vtanh.pop %v390
      %394 = vst.msk [vmem:[#allocation13] sm:$0x3] %vm225, %v393
    $region41: #{attention_forward.1} parent=1 // pred_fallthru
      _
    // Predicated region
    $region42: #{attention_forward.1} parent=1 // pred_check
      _
    $region43: #{attention_forward.1} parent=1 // pred_check_branch
      %396 = sbr.rel (0) target = $region45
    $region44: #{attention_forward.1} parent=1 // pred_region
      %s398 = ssub.s32 32, 32
      %399 = vsyncadd [#allocation7], %s398
      %s401 = sshll.u32 [#allocation13], 4
      %s402 = int_to_ptr.vmem [resolvable:$true] %s401
      %404 = dma.vmem_to_hbm [thread:$0]  %s402, 32, %s4, [#allocation7]
    $region45: #{attention_forward.1} parent=1 // pred_fallthru
      _
    // Predicated region
    $region46: #{attention_forward.1} parent=1 // pred_check
      _
    $region47: #{attention_forward.1} parent=1 // pred_check_branch
      %406 = sbr.rel (0) target = $region49
    $region48: #{attention_forward.1} parent=1 // pred_region
      %407 = dma.done [#allocation7], 32
    $region49: #{attention_forward.1} parent=1 // pred_fallthru
      _
    %408 = vsyncpa [#allocation6], 1
    %409 = vsyncpa [#allocation9], 1
    %410 = vsyncpa [#allocation12], 1
    %411 = vsyncpa [#allocation7], 1

</llo_original>
